<compile_context>
chip_gen: v6e
topology: v6e:2x2x1
jax: 0.10.0
libtpu: 0.0.40
codegen_flags: <defaults>
</compile_context>

<pallas_src>
import jax
import jax.numpy as jnp
from jax.experimental import pallas as pl
from jax.experimental.pallas import tpu as pltpu

IN_FEATURES = 3
OUT_FEATURES = 1
LANE = 128                # TPU lane width
DEFAULT_BLOCK_B = 65536   # batch lanes per grid step (multiple of 128); ~768 KiB input block


def linear_kernel(wb_ref, x_ref, o_ref):
    """wb_ref: SMEM (4,) = [w0, w1, w2, b]
       x_ref : VMEM (3, TB)  -- features on sublanes, batch on lanes
       o_ref : VMEM (1, TB)  -- lane-dense output slab
    """
    o_ref[...] = (
        wb_ref[0] * x_ref[0:1, :]
        + wb_ref[1] * x_ref[1:2, :]
        + wb_ref[2] * x_ref[2:3, :]
        + wb_ref[3]
    )


def y_tron_forward(x, weight, bias, *, block_b=DEFAULT_BLOCK_B):
    """x: (B, 3) float32; weight: (1, 3) (torch Linear layout); bias: (1,). Returns (B, 1)."""
    B = x.shape[0]

    # Lane-dense layout: (B, 3) -> (3, B); pad only the lane (batch) axis.
    x_t = x.astype(jnp.float32).T                          # (3, B)
    tb = min(block_b, pl.cdiv(B, LANE) * LANE)             # batch tile, multiple of 128
    B_pad = pl.cdiv(B, tb) * tb
    if B_pad != B:
        x_t = jnp.pad(x_t, ((0, 0), (0, B_pad - B)))       # cheap fused pad, no 128-wide slab

    # 3 weights + bias as SMEM scalars: no weight DMA tile, no MXU.
    wb = jnp.concatenate(
        [weight.reshape(-1).astype(jnp.float32), bias.reshape(-1).astype(jnp.float32)]
    )                                                      # (4,)

    out = pl.pallas_call(
        linear_kernel,
        out_shape=jax.ShapeDtypeStruct((OUT_FEATURES, B_pad), jnp.float32),
        grid=(B_pad // tb,),
        in_specs=[
            pl.BlockSpec(memory_space=pltpu.MemorySpace.SMEM),        # wb scalars
            pl.BlockSpec((IN_FEATURES, tb), lambda i: (0, i)),        # x tile
        ],
        out_specs=pl.BlockSpec((OUT_FEATURES, tb), lambda i: (0, i)),
        compiler_params=pltpu.CompilerParams(dimension_semantics=("parallel",)),
        cost_estimate=pl.CostEstimate(
            flops=2 * B * IN_FEATURES + B,
            transcendentals=0,
            bytes_accessed=B * IN_FEATURES * 4 + B * 4 + 16,
        ),
    )(wb, x_t)

    # (1, B_pad) -> (B, 1), dropping lane padding.
    return out[:, :B].T
    # TODO(synk): for tiny batches (B in the tens) a standalone pallas_call is overhead-bound;
    # prefer letting XLA fuse x @ W.T + b into the surrounding graph in that regime.


if __name__ == "__main__":
    key = jax.random.PRNGKey(0)
    kx, kw, kb, kx2 = jax.random.split(key, 4)

    # PyTorch Linear default init: U(-1/sqrt(fan_in), 1/sqrt(fan_in))
    bound = 1.0 / jnp.sqrt(float(IN_FEATURES))
    weight = jax.random.uniform(kw, (OUT_FEATURES, IN_FEATURES), jnp.float32,
                                minval=-bound, maxval=bound)
    bias = jax.random.uniform(kb, (OUT_FEATURES,), jnp.float32,
                              minval=-bound, maxval=bound)

    # Small batch of pitch-feature vectors (B, 3)
    x = jax.random.normal(kx, (8, IN_FEATURES), jnp.float32)
    y = y_tron_forward(x, weight, bias)
    jax.block_until_ready(y)
    y_ref = x @ weight.T + bias
    assert y.shape == (8, OUT_FEATURES)
    assert jnp.allclose(y, y_ref, atol=1e-5), "mismatch vs reference (B=8)"

    # Also exercise the lane-pad + slice path with B not a multiple of 128.
    x2 = jax.random.normal(kx2, (200, IN_FEATURES), jnp.float32)
    y2 = y_tron_forward(x2, weight, bias)
    jax.block_until_ready(y2)
    y2_ref = x2 @ weight.T + bias
    assert y2.shape == (200, OUT_FEATURES)
    assert jnp.allclose(y2, y2_ref, atol=1e-5), "mismatch vs reference (B=200)"

    print("KERNEL_OK")
</pallas_src>

<mosaic_0001>
module attributes {stable_mosaic.version = 11 : i64} {
  func.func @linear_kernel(%arg0: i32, %arg1: memref<4xf32, #tpu.memory_space<smem>>, %arg2: memref<3x128xf32, #tpu.memory_space<vmem>>, %arg3: memref<1x128xf32, #tpu.memory_space<vmem>>) attributes {dimension_semantics = [#tpu.dimension_semantics<parallel>], iteration_bounds = array<i64: 1>, scalar_prefetch = 0 : i64, scratch_operands = 0 : i64, tpu.core_type = #tpu.core_type<tc>, window_params = [{transform_indices = @transform_0, window_bounds = array<i64: 4>}, {transform_indices = @transform_1, window_bounds = array<i64: 3, 128>}, {transform_indices = @transform_2, window_bounds = array<i64: 1, 128>}]} {
    %c0 = arith.constant 0 : index
    %0 = memref.load %arg1[%c0] : memref<4xf32, #tpu.memory_space<smem>>
    %c0_0 = arith.constant 0 : index
    %c0_1 = arith.constant 0 : index
    %1 = vector.load %arg2[%c0_0, %c0_1] : memref<3x128xf32, #tpu.memory_space<vmem>>, vector<1x128xf32>
    %2 = vector.broadcast %0 : f32 to vector<1x128xf32>
    %3 = arith.mulf %2, %1 : vector<1x128xf32>
    %c1 = arith.constant 1 : index
    %4 = memref.load %arg1[%c1] : memref<4xf32, #tpu.memory_space<smem>>
    %c1_2 = arith.constant 1 : index
    %c0_3 = arith.constant 0 : index
    %5 = vector.load %arg2[%c1_2, %c0_3] : memref<3x128xf32, #tpu.memory_space<vmem>>, vector<1x128xf32>
    %6 = vector.broadcast %4 : f32 to vector<1x128xf32>
    %7 = arith.mulf %6, %5 : vector<1x128xf32>
    %8 = arith.addf %3, %7 : vector<1x128xf32>
    %c2 = arith.constant 2 : index
    %9 = memref.load %arg1[%c2] : memref<4xf32, #tpu.memory_space<smem>>
    %c2_4 = arith.constant 2 : index
    %c0_5 = arith.constant 0 : index
    %10 = vector.load %arg2[%c2_4, %c0_5] : memref<3x128xf32, #tpu.memory_space<vmem>>, vector<1x128xf32>
    %11 = vector.broadcast %9 : f32 to vector<1x128xf32>
    %12 = arith.mulf %11, %10 : vector<1x128xf32>
    %13 = arith.addf %8, %12 : vector<1x128xf32>
    %c3 = arith.constant 3 : index
    %14 = memref.load %arg1[%c3] : memref<4xf32, #tpu.memory_space<smem>>
    %15 = vector.broadcast %14 : f32 to vector<1x128xf32>
    %16 = arith.addf %13, %15 : vector<1x128xf32>
    %c0_6 = arith.constant 0 : index
    %c0_7 = arith.constant 0 : index
    %17 = vector.load %arg3[%c0_6, %c0_7] : memref<1x128xf32, #tpu.memory_space<vmem>>, vector<1x128xf32>
    tpu.vector_store %arg3[%c0_6, %c0_7], %16 {strides = array<i32>} : memref<1x128xf32, #tpu.memory_space<vmem>>, vector<1x128xf32>,
    return
  }
  func.func @transform_0(%arg0: i32) -> i32 {
    %c0_i32 = arith.constant 0 : i32
    %c0_i32_0 = arith.constant 0 : i32
    return %c0_i32 : i32
  }
  func.func @transform_1(%arg0: i32) -> (i32, i32) {
    %c0_i32 = arith.constant 0 : i32
    %c0_i32_0 = arith.constant 0 : i32
    return %c0_i32, %arg0 : i32, i32
  }
  func.func @transform_2(%arg0: i32) -> (i32, i32) {
    %c0_i32 = arith.constant 0 : i32
    %c0_i32_0 = arith.constant 0 : i32
    return %c0_i32, %arg0 : i32, i32
  }
}

</mosaic_0001>

<llo_original>
// kernel: tpu_custom_call.1
$region0: #{tpu_custom_call.1}
  #allocation0 [shape = 'u32[]', space=smem, size = 0x4, offset = 0x4, fixed_abs, tag = 'smem constant byte address 0x4 - core index']
  #allocation1 [shape = 'u32[144,128]{1,0:T(1,128)}', space=vmem, size = 0x12000, scoped, tag = 'internal scratch']
  %s0 = inlined_call_operand.hbm [shape: f32[4], index: 0, kind: input, shape index: {}]
  %s1 = inlined_call_operand.hbm [shape: f32[3,128], index: 1, kind: input, shape index: {}]
  %s2 = inlined_call_operand.hbm [shape: f32[1,128], index: 2, kind: output, shape index: {}]
  %s3 = sld [smem:[#allocation0]]
  $region26: #{tpu_custom_call.1} parent=0
    _
  %s5 = ssub.s32 1, %s3
  %s6 = scalar_select 0, %s5, %s3
  $region1: #{tpu_custom_call.1} parent=0
    #allocation2 [shape = 'u8[512]{0}', space=smem, size = 0x200, scoped, tag = 'input window, operand 0, single buffered']
    #allocation3 [shape = 's32[1]{0}', space=sflag, size = 0x4, scoped, tag = 'scoped memory for tpu_custom_call.1']
    #allocation4 [shape = 's32[1]{0}', space=sflag, size = 0x4, scoped, tag = 'scoped memory for tpu_custom_call.1']
    #allocation5 [shape = 's32[1]{0}', space=sflag, size = 0x4, scoped, tag = 'scoped memory for tpu_custom_call.1']
    #allocation6 [shape = 'u8[2048]{0}', space=vmem, size = 0x800, scoped, tag = 'input window, operand 1, single buffered']
    #allocation7 [shape = 'u8[512]{0}', space=vmem, size = 0x400, scoped, tag = 'output window, operand 0, single buffered']
    %7 = vsyncpa [#allocation5], 0
    %8 = vsyncpa [#allocation3], 0
    %9 = vsyncpa [#allocation4], 0
    // Predicated region
    $region2: #{tpu_custom_call.1} parent=1 // pred_check
      _
    $region3: #{tpu_custom_call.1} parent=1 // pred_check_branch
      %11 = sbr.rel (0) target = $region5
    $region4: #{tpu_custom_call.1} parent=1 // pred_region
      %s13 = ssub.s32 16, 16
      %14 = vsyncadd [#allocation5], %s13
      %17 = dma.hbm_to_smem %s0, 16, [#allocation2], [#allocation5]
    $region5: #{tpu_custom_call.1} parent=1 // pred_fallthru
      _
    // Predicated region
    $region6: #{tpu_custom_call.1} parent=1 // pred_check
      _
    $region7: #{tpu_custom_call.1} parent=1 // pred_check_branch
      %19 = sbr.rel (0) target = $region9
    $region8: #{tpu_custom_call.1} parent=1 // pred_region
      %s21 = ssub.s32 64, 64
      %22 = vsyncadd [#allocation3], %s21
      %s24 = sshll.u32 [#allocation6], 4
      %s25 = int_to_ptr.vmem [resolvable:$true] %s24
      %27 = dma.hbm_to_vmem [thread:$0]  %s1, 64, %s25, [#allocation3]
    $region9: #{tpu_custom_call.1} parent=1 // pred_fallthru
      _
    // Predicated region
    $region10: #{tpu_custom_call.1} parent=1 // pred_check
      _
    $region11: #{tpu_custom_call.1} parent=1 // pred_check_branch
      %29 = sbr.rel (0) target = $region13
    $region12: #{tpu_custom_call.1} parent=1 // pred_region
      %30 = dma.done [#allocation5], 16
    $region13: #{tpu_custom_call.1} parent=1 // pred_fallthru
      _
    // Predicated region
    $region14: #{tpu_custom_call.1} parent=1 // pred_check
      _
    $region15: #{tpu_custom_call.1} parent=1 // pred_check_branch
      %32 = sbr.rel (0) target = $region17
    $region16: #{tpu_custom_call.1} parent=1 // pred_region
      %33 = dma.done [#allocation3], 64
    $region17: #{tpu_custom_call.1} parent=1 // pred_fallthru
      _
    %34 = sfence
    %s35 = sld [smem:[#allocation2]]
    %v36 = vld [vmem:[#allocation6] sm:$0x1]
    %v37 = vstv %s35
    %v38 = vmul.f32 %v37, %v36
    %s39 = sld [smem:[#allocation2 + $0x1]]
    %v40 = vld [vmem:[#allocation6 + $0x1] sm:$0x1]
    %v41 = vstv %s39
    %v42 = vmul.f32 %v41, %v40
    %v43 = vadd.f32 %v38, %v42
    %s44 = sld [smem:[#allocation2 + $0x2]]
    %v45 = vld [vmem:[#allocation6 + $0x2] sm:$0x1]
    %v46 = vstv %s44
    %v47 = vmul.f32 %v46, %v45
    %v48 = vadd.f32 %v43, %v47
    %s49 = sld [smem:[#allocation2 + $0x3]]
    %v50 = vstv %s49
    %v51 = vadd.f32 %v48, %v50
    %52 = vst [vmem:[#allocation7] sm:$0x1] %v51
    // Predicated region
    $region18: #{tpu_custom_call.1} parent=1 // pred_check
      _
    $region19: #{tpu_custom_call.1} parent=1 // pred_check_branch
      %54 = sbr.rel (0) target = $region21
    $region20: #{tpu_custom_call.1} parent=1 // pred_region
      %s56 = ssub.s32 16, 16
      %57 = vsyncadd [#allocation4], %s56
      %s59 = sshll.u32 [#allocation7], 4
      %s60 = int_to_ptr.vmem [resolvable:$true] %s59
      %62 = dma.vmem_to_hbm [thread:$0]  %s60, 16, %s2, [#allocation4]
    $region21: #{tpu_custom_call.1} parent=1 // pred_fallthru
      _
    // Predicated region
    $region22: #{tpu_custom_call.1} parent=1 // pred_check
      _
    $region23: #{tpu_custom_call.1} parent=1 // pred_check_branch
      %64 = sbr.rel (0) target = $region25
    $region24: #{tpu_custom_call.1} parent=1 // pred_region
      %65 = dma.done [#allocation4], 16
    $region25: #{tpu_custom_call.1} parent=1 // pred_fallthru
      _
    %66 = vsyncpa [#allocation3], 1
    %67 = vsyncpa [#allocation4], 1
    %68 = vsyncpa [#allocation5], 1

</llo_original>
